<compile_context>
chip_gen: v7x
topology: tpu7x:2x2x1
jax: 0.10.0
libtpu: 0.0.40
codegen_flags: <defaults>
</compile_context>

<pallas_src>
import functools
import math

import jax
import jax.numpy as jnp
from jax.experimental import pallas as pl
from jax.experimental.pallas import tpu as pltpu

_LANES = 128


def _vmem_capacity_bytes(default=64 * 1024 * 1024):
    """VMEM of the current TPU generation (conservative 64 MiB fallback)."""
    try:
        info = pltpu.get_tpu_info()
        cap = getattr(info, "vmem_capacity_bytes", None)
        if cap:
            return int(cap)
    except Exception:
        pass
    return default


def _xent_kernel(tgt_ref, lp_ref, out_ref, *, pad_index, smoothing, vocab_size,
                 n_rows, chunk):
    i = pl.program_id(0)
    tgt = tgt_ref[...]                                    # (TM, 1) int32
    tm = tgt.shape[0]

    # Mask for the ragged last tile (rows >= n_rows) and for padding targets.
    row = i * tm + jax.lax.broadcasted_iota(jnp.int32, (tm, 1), 0)
    not_pad = jnp.logical_and(tgt != pad_index, row < n_rows)        # (TM, 1)

    need_row_sum = smoothing > 0.0
    num_full = vocab_size // chunk
    rem = vocab_size - num_full * chunk

    def chunk_stats(start, width):
        """(lp[tgt] partial, rowsum partial) over lanes [start, start+width)."""
        lp_c = lp_ref[:, pl.ds(start, width)]             # (TM, width) src dtype
        col = start + jax.lax.broadcasted_iota(jnp.int32, (1, width), 1)
        is_tgt = col == tgt                               # (TM, width) broadcast
        if need_row_sum:
            lp_f = lp_c.astype(jnp.float32)               # bounded to O(TM*CHUNK)
            lp_t = jnp.sum(jnp.where(is_tgt, lp_f, 0.0), axis=1, keepdims=True)
            rsum = jnp.sum(lp_f, axis=1, keepdims=True)
        else:
            # Select in source dtype (exact: at most one nonzero per row),
            # upconvert only the (TM, 1) result for accumulation.
            sel = jnp.where(is_tgt, lp_c, jnp.zeros_like(lp_c))
            lp_t = jnp.sum(sel, axis=1, keepdims=True).astype(jnp.float32)
            rsum = jnp.zeros((tm, 1), jnp.float32)
        return lp_t, rsum

    lp_t = jnp.zeros((tm, 1), jnp.float32)
    row_sum = jnp.zeros((tm, 1), jnp.float32)

    if num_full > 0:
        def body(c, carry):
            acc_t, acc_s = carry
            start = pl.multiple_of(c * chunk, chunk)
            d_t, d_s = chunk_stats(start, chunk)
            return acc_t + d_t, acc_s + d_s

        lp_t, row_sum = jax.lax.fori_loop(
            0, num_full, body, (lp_t, row_sum),
            unroll=True if num_full <= 8 else 4)

    if rem > 0:                                           # static remainder chunk
        d_t, d_s = chunk_stats(num_full * chunk, rem)
        lp_t = lp_t + d_t
        row_sum = row_sum + d_s

    if smoothing <= 0.0:
        # NLLLoss(ignore_index=pad, reduction='sum')
        contrib = -lp_t                                   # (TM, 1)
    else:
        # KLDivLoss(reduction='sum') against the smoothed distribution,
        # algebraically collapsed per non-pad row.
        eps = smoothing / (vocab_size - 2)
        one_m = 1.0 - smoothing
        const = (vocab_size - 2) * eps * math.log(eps)
        if one_m > 0.0:
            const += one_m * math.log(one_m)              # 0*log0 := 0
        lp_pad = lp_ref[:, pad_index:pad_index + 1].astype(jnp.float32)  # (TM,1)
        contrib = (jnp.float32(const)
                   - jnp.float32(eps) * row_sum
                   + jnp.float32(eps - one_m) * lp_t
                   + jnp.float32(eps) * lp_pad)

    partial = jnp.sum(jnp.where(not_pad, contrib, 0.0), keepdims=True)   # (1, 1)
    out_ref[...] = partial.reshape(1, 1, 1)


def xent_loss(log_probs, targets, *, pad_index, smoothing=0.0, tm=None,
              chunk=1024):
    """Pallas implementation of XentLoss.forward -> scalar loss (sum)."""
    V = log_probs.shape[-1]
    N = log_probs.size // V
    if smoothing > 0.0 and V <= 2:
        raise ValueError("label smoothing requires vocab_size > 2")

    # Keep the source dtype in HBM (no f32 copy of the big matrix).
    lp = log_probs.reshape(N, V)
    dtype_bytes = jnp.dtype(lp.dtype).itemsize
    sub = max(8, 32 // dtype_bytes)              # sublane packing (8 f32, 16 bf16)

    v_pad = pl.cdiv(V, _LANES) * _LANES
    eff_chunk = max(_LANES, (min(int(chunk), v_pad) // _LANES) * _LANES)

    vmem_cap = _vmem_capacity_bytes()
    budget = int(vmem_cap * 0.7)                 # headroom for compiler scratch

    # True per-row VMEM bytes: double-buffered lp tile, double-buffered
    # lane-padded (tm,1) targets, f32 chunk temporaries (cast/mask/select),
    # and (tm,1) f32 accumulators.
    per_row = (2 * v_pad * dtype_bytes
               + 2 * _LANES * 4
               + 3 * eff_chunk * 4
               + 4 * _LANES * 4)

    if tm is None:
        tm_vmem = budget // per_row
        tm_bytes = max(1, (16 << 20) // (v_pad * dtype_bytes))  # <=16MiB/lp buffer
        tm_split = pl.cdiv(N, 8)                 # aim for >= 8 grid steps
        tm = min(tm_vmem, tm_bytes, tm_split)
    tm = max(sub, (int(tm) // sub) * sub)
    tm = min(tm, max(sub, pl.cdiv(N, sub) * sub))

    num_tiles = pl.cdiv(N, tm)

    # Pad targets (cheap: N int32) with pad_index so the ragged last lp tile is
    # also masked by the pad test, not only the in-kernel row bound.
    n_pad_rows = num_tiles * tm
    tgt = targets.reshape(N).astype(jnp.int32)
    if n_pad_rows != N:
        tgt = jnp.pad(tgt, (0, n_pad_rows - N), constant_values=pad_index)
    tgt = tgt.reshape(n_pad_rows, 1)

    # Scoped VMEM limit covering the real footprint (input buffers + temps).
    need = tm * per_row + (2 << 20)
    vmem_limit = int(min(vmem_cap, max(32 << 20, need)))

    kernel = functools.partial(
        _xent_kernel,
        pad_index=int(pad_index),
        smoothing=float(smoothing),
        vocab_size=V,
        n_rows=N,
        chunk=eff_chunk,
    )

    flops = (5 if smoothing > 0.0 else 3) * N * V
    bytes_accessed = N * V * dtype_bytes + n_pad_rows * 4 + num_tiles * 4
    cost = pl.CostEstimate(flops=int(flops), transcendentals=0,
                           bytes_accessed=int(bytes_accessed))

    partials = pl.pallas_call(
        kernel,
        out_shape=jax.ShapeDtypeStruct((num_tiles, 1, 1), jnp.float32),
        grid_spec=pltpu.PrefetchScalarGridSpec(
            num_scalar_prefetch=0,
            grid=(num_tiles,),
            in_specs=[
                pl.BlockSpec((tm, 1), lambda i: (i, 0)),   # targets
                pl.BlockSpec((tm, V), lambda i: (i, 0)),   # log_probs
            ],
            out_specs=pl.BlockSpec((1, 1, 1), lambda i: (i, 0, 0)),
        ),
        compiler_params=pltpu.CompilerParams(
            dimension_semantics=("parallel",),
            vmem_limit_bytes=vmem_limit,
        ),
        cost_estimate=cost,
    )(tgt, lp)
    return jnp.sum(partials)


# ---------------------------------------------------------------------------
# Pure-JAX reference (mirrors the PyTorch module) for verification.
# ---------------------------------------------------------------------------
def _reference(log_probs, targets, pad_index, smoothing):
    V = log_probs.shape[-1]
    lp = log_probs.reshape(-1, V).astype(jnp.float32)
    tgt = targets.reshape(-1)
    if smoothing <= 0.0:
        picked = jnp.take_along_axis(lp, tgt[:, None], axis=1)[:, 0]
        mask = tgt != pad_index
        return -jnp.sum(jnp.where(mask, picked, 0.0))
    eps = smoothing / (V - 2)
    p = jnp.full((tgt.shape[0], V), eps, jnp.float32)
    p = p.at[jnp.arange(tgt.shape[0]), tgt].set(1.0 - smoothing)
    p = p.at[:, pad_index].set(0.0)
    p = jnp.where((tgt != pad_index)[:, None], p, 0.0)
    logp = jnp.log(jnp.where(p > 0.0, p, 1.0))
    return jnp.sum(jnp.where(p > 0.0, p * (logp - lp), 0.0))


if __name__ == "__main__":
    key = jax.random.PRNGKey(0)
    PAD = 1
    ok = True

    def _check(log_probs, targets, smoothing, tol, **kw):
        global ok
        out = xent_loss(log_probs, targets, pad_index=PAD, smoothing=smoothing,
                        **kw)
        out = jax.block_until_ready(out)
        ref = _reference(log_probs, targets, PAD, smoothing)
        if not jnp.allclose(out, ref, rtol=tol, atol=tol):
            ok = False
            print(f"MISMATCH smoothing={smoothing} dtype={log_probs.dtype} "
                  f"V={log_probs.shape[-1]}: kernel={out} ref={ref}")

    # Primary small case: batch=2, seq=8, vocab=128.
    B, S, V = 2, 8, 128
    k_logit, k_tgt = jax.random.split(key)
    logits = jax.random.normal(k_logit, (B, S, V), jnp.float32)
    log_probs = jax.nn.log_softmax(logits, axis=-1)
    targets = jax.random.randint(k_tgt, (B, S), 0, V, jnp.int32)
    targets = targets.at[0, 5:].set(PAD)
    targets = targets.at[1, 6:].set(PAD)

    for smoothing in (0.0, 0.1):
        _check(log_probs, targets, smoothing, 1e-5)
        _check(log_probs.astype(jnp.bfloat16), targets, smoothing, 2e-3)

    # Secondary case exercising the multi-chunk vocab loop (dynamic lane slices).
    V2 = 2560
    k_logit2, k_tgt2 = jax.random.split(k_logit)
    logits2 = jax.random.normal(k_logit2, (B, S, V2), jnp.float32)
    log_probs2 = jax.nn.log_softmax(logits2, axis=-1)
    targets2 = jax.random.randint(k_tgt2, (B, S), 0, V2, jnp.int32)
    targets2 = targets2.at[0, 4:].set(PAD)
    for smoothing in (0.0, 0.1):
        _check(log_probs2, targets2, smoothing, 1e-5, chunk=256)

    if ok:
        print("KERNEL_OK")
</pallas_src>

<mosaic_0001>
module attributes {stable_mosaic.version = 11 : i64} {
  func.func @_xent_kernel(%arg0: i32, %arg1: memref<8x1xi32, #tpu.memory_space<vmem>>, %arg2: memref<8x128xf32, #tpu.memory_space<vmem>>, %arg3: memref<1x1x1xf32, #tpu.memory_space<vmem>>) attributes {dimension_semantics = [#tpu.dimension_semantics<parallel>], iteration_bounds = array<i64: 2>, scalar_prefetch = 0 : i64, scratch_operands = 0 : i64, tpu.core_type = #tpu.core_type<tc>, window_params = [{transform_indices = @transform_0, window_bounds = array<i64: 8, 1>}, {transform_indices = @transform_1, window_bounds = array<i64: 8, 128>}, {transform_indices = @transform_2, window_bounds = array<i64: 1, 1, 1>}]} {
    %c0 = arith.constant 0 : index
    %c0_0 = arith.constant 0 : index
    %0 = vector.load %arg1[%c0, %c0_0] : memref<8x1xi32, #tpu.memory_space<vmem>>, vector<8x1xi32>
    %c8_i32 = arith.constant 8 : i32
    %1 = arith.muli %arg0, %c8_i32 : i32
    %2 = tpu.iota {dimensions = array<i32: 0>} : vector<8x1xi32>
    %3 = vector.broadcast %1 : i32 to vector<8x1xi32>
    %4 = arith.addi %3, %2 : vector<8x1xi32>
    %c1_i32 = arith.constant 1 : i32
    %5 = vector.broadcast %c1_i32 : i32 to vector<8x1xi32>
    %6 = arith.cmpi ne, %0, %5 : vector<8x1xi32>
    %c16_i32 = arith.constant 16 : i32
    %7 = vector.broadcast %c16_i32 : i32 to vector<8x1xi32>
    %8 = arith.cmpi slt, %4, %7 : vector<8x1xi32>
    %9 = arith.andi %6, %8 : vector<8x1xi1>
    %cst = arith.constant 0.000000e+00 : f32
    %10 = vector.broadcast %cst : f32 to vector<8x1xf32>
    %c0_i32 = arith.constant 0 : i32
    %c128_i32 = arith.constant 128 : i32
    %11 = arith.muli %c0_i32, %c128_i32 : i32
    %12 = tpu.assume_multiple %11, 128 : i32
    %c0_1 = arith.constant 0 : index
    %13 = arith.index_cast %12 : i32 to index
    %14 = vector.load %arg2[%c0_1, %13] : memref<8x128xf32, #tpu.memory_space<vmem>>, vector<8x128xf32>
    %15 = tpu.iota {dimensions = array<i32: 1>} : vector<1x128xi32>
    %16 = vector.broadcast %12 : i32 to vector<1x128xi32>
    %17 = arith.addi %16, %15 : vector<1x128xi32>
    %18 = vector.broadcast %17 : vector<1x128xi32> to vector<8x128xi32>
    %19 = vector.broadcast %0 : vector<8x1xi32> to vector<8x128xi32>
    %20 = arith.cmpi eq, %18, %19 : vector<8x128xi32>
    %cst_2 = arith.constant 0.000000e+00 : f32
    %21 = vector.broadcast %cst_2 : f32 to vector<8x128xf32>
    %22 = arith.select %20, %14, %21 : vector<8x128xi1>, vector<8x128xf32>
    %cst_3 = arith.constant dense<0.000000e+00> : vector<8xf32>
    %23 = vector.multi_reduction <add>, %22, %cst_3 [1] : vector<8x128xf32> to vector<8xf32>
    %24 = vector.shape_cast %23 : vector<8xf32> to vector<8x1xf32>
    %25 = arith.addf %10, %24 : vector<8x1xf32>
    %c1_i32_4 = arith.constant 1 : i32
    %cst_5 = arith.constant 0.000000e+00 : f32
    %26 = vector.broadcast %cst_5 : f32 to vector<8x1xf32>
    %27 = arith.subf %26, %25 : vector<8x1xf32>
    %cst_6 = arith.constant 0.000000e+00 : f32
    %28 = vector.broadcast %cst_6 : f32 to vector<8x1xf32>
    %29 = arith.select %9, %27, %28 : vector<8x1xi1>, vector<8x1xf32>
    %30 = vector.shape_cast %29 : vector<8x1xf32> to vector<1x8x1xf32>
    %cst_7 = arith.constant dense<0.000000e+00> : vector<1xf32>
    %31 = vector.multi_reduction <add>, %30, %cst_7 [1, 2] : vector<1x8x1xf32> to vector<1xf32>
    %32 = vector.shape_cast %31 : vector<1xf32> to vector<1x1x1xf32>
    %33 = vector.extract %32[0, 0, 0] : f32 from vector<1x1x1xf32>
    %34 = vector.broadcast %33 : f32 to vector<1x1xf32>
    %35 = vector.shape_cast %34 : vector<1x1xf32> to vector<1x1x1xf32>
    %c0_8 = arith.constant 0 : index
    %c0_9 = arith.constant 0 : index
    %c0_10 = arith.constant 0 : index
    %36 = vector.load %arg3[%c0_8, %c0_9, %c0_10] : memref<1x1x1xf32, #tpu.memory_space<vmem>>, vector<1x1x1xf32>
    tpu.vector_store %arg3[%c0_8, %c0_9, %c0_10], %35 {strides = array<i32>} : memref<1x1x1xf32, #tpu.memory_space<vmem>>, vector<1x1x1xf32>,
    return
  }
  func.func @transform_0(%arg0: i32) -> (i32, i32) {
    %c0_i32 = arith.constant 0 : i32
    %c0_i32_0 = arith.constant 0 : i32
    return %arg0, %c0_i32 : i32, i32
  }
  func.func @transform_1(%arg0: i32) -> (i32, i32) {
    %c0_i32 = arith.constant 0 : i32
    %c0_i32_0 = arith.constant 0 : i32
    return %arg0, %c0_i32 : i32, i32
  }
  func.func @transform_2(%arg0: i32) -> (i32, i32, i32) {
    %c0_i32 = arith.constant 0 : i32
    %c0_i32_0 = arith.constant 0 : i32
    %c0_i32_1 = arith.constant 0 : i32
    return %arg0, %c0_i32, %c0_i32_0 : i32, i32, i32
  }
}

</mosaic_0001>

<llo_original>
// kernel: tpu_custom_call.1
$region0: #{tpu_custom_call.1}
  #allocation0 [shape = 'u32[]', space=smem, size = 0x4, offset = 0x4, fixed_abs, tag = 'smem constant byte address 0x4 - core index']
  #allocation1 [shape = 'u32[144,128]{1,0:T(1,128)}', space=vmem, size = 0x12000, scoped, tag = 'internal scratch']
  %s0 = inlined_call_operand.vmem [shape: s32[16,1], index: 0, kind: input, shape index: {}]
  %s1 = inlined_call_operand.vmem [shape: f32[16,128], index: 1, kind: input, shape index: {}]
  %s2 = inlined_call_operand.vmem [shape: f32[2,1,1], index: 2, kind: output, shape index: {}]
  %s3 = sld [smem:[#allocation0]]
  $region41: #{tpu_custom_call.1} parent=0
    _
  %s5 = ssub.s32 1, %s3
  %s6 = scalar_select 0, %s5, %s3
  loop: start=0, step=1, limit=4
  $region2: #{tpu_custom_call.1} parent=0 // loop_pre_header
    _
  $region3: #{tpu_custom_call.1} parent=0 // loop_header
    %s8 = sphi 0, %s12
    %p9 = scmp.ge.s32.totalorder %s8, 4
    %s18 = sphi 0, %s20
    %s21 = sphi 0, %s18
    %s22 = sphi 0, %s21
    %s38 = sphi 0, %s22
    %s44 = sphi 0, %s46
    %s47 = sphi 0, %s44
    %s48 = sphi 0, %s47
    %s64 = sphi 0, %s48
    %s70 = sphi 0, %s72
    %s73 = sphi 0, %s70
    %s74 = sphi 0, %s73
    %s90 = sphi 0, %s74
  $region4: #{tpu_custom_call.1} parent=0 // loop_header_branch
    %11 = sbr.rel (%p9) target = $region8
  $region5: #{tpu_custom_call.1} parent=0 // loop_body
    %s13 = ssub.s32 %s8, 1
    %s14 = ssub.s32 %s8, 2
    %s15 = sadd.s32 %s8, 1
    %s16 = ssub.s32 %s8, %s15
    %p17 = scmp.eq.s32.totalorder %s16, 0
    %s19 = sadd.s32 %s18, 1
    %s20 = scalar_select %p17, %s18, %s19
    %p23 = pneg %p17
    %p24 = scmp.eq.s32.totalorder %s8, 1
    %p25 = por %p23, %p24
    %p26 = scmp.ne.s32.totalorder %s18, %s21
    %p27 = scmp.eq.s32.totalorder %s8, 0
    %p28 = por %p26, %p27
    %p29 = scmp.ne.s32.totalorder %s18, %s21
    %p30 = scmp.eq.s32.totalorder %s13, 1
    %p31 = por %p29, %p30
    %p32 = scmp.ne.s32.totalorder %s21, %s22
    %p33 = scmp.eq.s32.totalorder %s13, 0
    %p34 = por %p32, %p33
    %p35 = scmp.ne.s32.totalorder %s21, %s22
    %p36 = scmp.eq.s32.totalorder %s14, 1
    %p37 = por %p35, %p36
    %p39 = scmp.ne.s32.totalorder %s22, %s38
    %p40 = scmp.eq.s32.totalorder %s14, 0
    %p41 = por %p39, %p40
    %s42 = ssub.s32 %s8, %s15
    %p43 = scmp.eq.s32.totalorder %s42, 0
    %s45 = sadd.s32 %s44, 1
    %s46 = scalar_select %p43, %s44, %s45
    %p49 = pneg %p43
    %p50 = scmp.eq.s32.totalorder %s8, 1
    %p51 = por %p49, %p50
    %p52 = scmp.ne.s32.totalorder %s44, %s47
    %p53 = scmp.eq.s32.totalorder %s8, 0
    %p54 = por %p52, %p53
    %p55 = scmp.ne.s32.totalorder %s44, %s47
    %p56 = scmp.eq.s32.totalorder %s13, 1
    %p57 = por %p55, %p56
    %p58 = scmp.ne.s32.totalorder %s47, %s48
    %p59 = scmp.eq.s32.totalorder %s13, 0
    %p60 = por %p58, %p59
    %p61 = scmp.ne.s32.totalorder %s47, %s48
    %p62 = scmp.eq.s32.totalorder %s14, 1
    %p63 = por %p61, %p62
    %p65 = scmp.ne.s32.totalorder %s48, %s64
    %p66 = scmp.eq.s32.totalorder %s14, 0
    %p67 = por %p65, %p66
    %s68 = ssub.s32 %s8, %s15
    %p69 = scmp.eq.s32.totalorder %s68, 0
    %s71 = sadd.s32 %s70, 1
    %s72 = scalar_select %p69, %s70, %s71
    %p75 = pneg %p69
    %p76 = scmp.eq.s32.totalorder %s8, 1
    %p77 = por %p75, %p76
    %p78 = scmp.ne.s32.totalorder %s70, %s73
    %p79 = scmp.eq.s32.totalorder %s8, 0
    %p80 = por %p78, %p79
    %p81 = scmp.ne.s32.totalorder %s70, %s73
    %p82 = scmp.eq.s32.totalorder %s13, 1
    %p83 = por %p81, %p82
    %p84 = scmp.ne.s32.totalorder %s73, %s74
    %p85 = scmp.eq.s32.totalorder %s13, 0
    %p86 = por %p84, %p85
    %p87 = scmp.ne.s32.totalorder %s73, %s74
    %p88 = scmp.eq.s32.totalorder %s14, 1
    %p89 = por %p87, %p88
    %p91 = scmp.ne.s32.totalorder %s74, %s90
    %p92 = scmp.eq.s32.totalorder %s14, 0
    %p93 = por %p91, %p92
    %p94 = scmp.le.s32.totalorder 1, %s8
    %p95 = scmp.lt.s32.totalorder %s8, 3
    %p96 = pnand %p94, %p95
    %p97 = pneg %p96
    // Predicated region
    $region9: #{tpu_custom_call.1} parent=5 // pred_check
      _
    $region10: #{tpu_custom_call.1} parent=5 // pred_check_branch
      %99 = sbr.rel (%p96) target = $region12
    $region11: #{tpu_custom_call.1} parent=5 // pred_region
      %s100 = ssub.s32 %s8, 1
    $region12: #{tpu_custom_call.1} parent=5 // pred_fallthru
      _
    %p101 = scmp.lt.s32.totalorder %s8, 2
    // Predicated region
    $region13: #{tpu_custom_call.1} parent=5 // pred_check
      %p102 = pneg %p101
    $region14: #{tpu_custom_call.1} parent=5 // pred_check_branch
      %104 = sbr.rel (%p102) target = $region16
    $region15: #{tpu_custom_call.1} parent=5 // pred_region
      // Predicated region
      $region17: #{tpu_custom_call.1} parent=15 // pred_check
        %p105 = pneg %p28
      $region18: #{tpu_custom_call.1} parent=15 // pred_check_branch
        %107 = sbr.rel (%p105) target = $region20
      $region19: #{tpu_custom_call.1} parent=15 // pred_region
        %p108 = scmp.lt.s32.totalorder %s8, 1
        %s109 = scalar_select %p108, %s8, 1
        %s110 = smul.addr %s109, 8
        %s111 = scalar_lea.vmem %s0, %s110
      $region20: #{tpu_custom_call.1} parent=15 // pred_fallthru
        _
      // Predicated region
      $region21: #{tpu_custom_call.1} parent=15 // pred_check
        %p112 = pneg %p54
      $region22: #{tpu_custom_call.1} parent=15 // pred_check_branch
        %114 = sbr.rel (%p112) target = $region24
      $region23: #{tpu_custom_call.1} parent=15 // pred_region
        %p115 = scmp.lt.s32.totalorder %s8, 1
        %s116 = scalar_select %p115, %s8, 1
        %s117 = smul.addr %s116, 8
        %s118 = scalar_lea.vmem %s1, %s117
      $region24: #{tpu_custom_call.1} parent=15 // pred_fallthru
        _
    $region16: #{tpu_custom_call.1} parent=5 // pred_fallthru
      _
    %p119 = scmp.le.s32.totalorder 1, %s8
    %p120 = scmp.lt.s32.totalorder %s8, 3
    %p121 = pnand %p119, %p120
    %p122 = pneg %p121
    // Predicated region
    $region25: #{tpu_custom_call.1} parent=5 // pred_check
      _
    $region26: #{tpu_custom_call.1} parent=5 // pred_check_branch
      %124 = sbr.rel (%p121) target = $region28
    $region27: #{tpu_custom_call.1} parent=5 // pred_region
      %s125 = ssub.s32 %s8, 1
      %p126 = scmp.lt.s32.totalorder %s13, 1
      %s127 = scalar_select %p126, %s13, 1
      %s128 = smul.addr %s127, 8
      %s129 = scalar_lea.vmem %s0, %s128
      %p130 = pneg %p34
      %p131 = pneg %p31
      %p132 = scmp.lt.s32.totalorder %s13, 1
      %s133 = scalar_select %p132, %s13, 1
      %s134 = smul.addr %s133, 8
      %s135 = scalar_lea.vmem %s1, %s134
      %p136 = pneg %p60
      %p137 = pneg %p57
      %p138 = pneg %p86
      %p139 = pneg %p83
      %p140 = scmp.lt.s32.totalorder %s13, 1
      %s141 = scalar_select %p140, %s13, 1
      %s142 = scalar_lea.vmem %s2, %s141
      %p143 = scmp.lt.s32.totalorder %s13, 1
      %s144 = scalar_select %p143, %s13, 1
      %s145 = smul.addr %s144, 8
      %s146 = scalar_lea.vmem %s0, %s145
      %p147 = scmp.lt.s32.totalorder %s13, 1
      %s148 = scalar_select %p147, %s13, 1
      %s149 = smul.addr %s148, 8
      %s150 = scalar_lea.vmem %s1, %s149
      %p151 = scmp.lt.s32.totalorder %s13, 1
      %s152 = scalar_select %p151, %s13, 1
      %s153 = scalar_lea.vmem %s2, %s152
      %v154 = vld [vmem:[%s146] sm:$0xff]
      %s155 = smul.u32 %s13, 8
      %v156 = vlaneseq
      %v157 = vshrl.u32 %v156, 7
      %v158 = vstv %s155
      %v159 = vadd.s32 %v158, %v157
      %vm160 = vcmp.ne.s32.totalorder %v154, 1
      %vm161 = vcmp.lt.s32.totalorder %v159, 16
      %vm162 = vmand %vm160, %vm161
      %v163 = vld [vmem:[%s150] sm:$0xff]
      %v164 = vlaneseq
      %v165 = vand.u32 %v164, 127
      %v166 = vstv 0
      %v167 = vadd.s32 %v166, %v165
      %168 = vset.pattern.permute.xlu0 0
      %169 = vperm.xlu0 %168, %v154
      %v170 = vpop.permute.xlu0 %169
      %vm171 = vcmp.eq.s32.totalorder %v167, %v170
      %v172 = vsel %vm171, %v163, 0.0
      %173 = vadd.xlane.f32.xlu0 %v172
      %v174 = vpop.xlane.xlu0 %173
      %v175 = vadd.f32 %v174, 0.0
      %v176 = vsub.f32 0.0, %v175
      %v177 = vsel %vm162, %v176, 0.0
      %vm178 = vcmask 7168
      %v179 = vsel %vm178, %v177, 0.0
      %180 = vadd.xlane.f32.xlu0 %v179
      %v181 = vpop.xlane.xlu0 %180
      %v182 = vrot.slane %v181, 4
      %v183 = vadd.f32 %v181, %v182
      %v184 = vrot.slane %v183, 2
      %v185 = vadd.f32 %v183, %v184
      %v186 = vrot.slane %v185, 1
      %v187 = vadd.f32 %v185, %v186
      %s188 = vtos %v187
      %v189 = vstv %s188
      %vm190 = vcmask 0
      %191 = vst.msk [vmem:[%s153] sm:$0x1] %vm190, %v189
      %p192 = scmp.lt.s32.totalorder %s13, 1
      %s193 = scalar_select %p192, %s13, 1
      %s194 = scalar_lea.vmem %s2, %s193
      // Predicated region
      $region29: #{tpu_custom_call.1} parent=27 // pred_check
        %p195 = pneg %p83
      $region30: #{tpu_custom_call.1} parent=27 // pred_check_branch
        %197 = sbr.rel (%p195) target = $region32
      $region31: #{tpu_custom_call.1} parent=27 // pred_region
        _
      $region32: #{tpu_custom_call.1} parent=27 // pred_fallthru
        _
    $region28: #{tpu_custom_call.1} parent=5 // pred_fallthru
      _
    %p198 = scmp.le.s32.totalorder 2, %s8
    // Predicated region
    $region33: #{tpu_custom_call.1} parent=5 // pred_check
      %p199 = pneg %p198
    $region34: #{tpu_custom_call.1} parent=5 // pred_check_branch
      %201 = sbr.rel (%p199) target = $region36
    $region35: #{tpu_custom_call.1} parent=5 // pred_region
      %s202 = ssub.s32 %s8, 2
      // Predicated region
      $region37: #{tpu_custom_call.1} parent=35 // pred_check
        %p203 = pneg %p89
      $region38: #{tpu_custom_call.1} parent=35 // pred_check_branch
        %205 = sbr.rel (%p203) target = $region40
      $region39: #{tpu_custom_call.1} parent=35 // pred_region
        %p206 = scmp.lt.s32.totalorder %s14, 1
        %s207 = scalar_select %p206, %s14, 1
        %s208 = scalar_lea.vmem %s2, %s207
      $region40: #{tpu_custom_call.1} parent=35 // pred_fallthru
        _
    $region36: #{tpu_custom_call.1} parent=5 // pred_fallthru
      _
  $region6: #{tpu_custom_call.1} parent=0 // loop_footer
    %s12 = sadd.s32 1, %s8
  $region7: #{tpu_custom_call.1} parent=0 // loop_footer_branch
    %7 = sbr.rel target = $region3
  $region8: #{tpu_custom_call.1} parent=0 // loop_exit
    _

</llo_original>
